<compile_context>
chip_gen: v7x
topology: tpu7x:2x2x1
jax: 0.10.0
libtpu: 0.0.40
codegen_flags: <defaults>
</compile_context>

<pallas_src>
import functools

import jax
import jax.numpy as jnp
from jax.experimental import pallas as pl
from jax.experimental.pallas import tpu as pltpu

_LANE = 128
_SUBLANE = 8


def _round_up(n, m):
    return ((n + m - 1) // m) * m


def _policy_kernel(xT_ref, w1T_ref, b1_ref, w2T_ref, b2_ref, w3T_ref, b3_ref,
                   o_ref, *, action_lower, action_upper):
    w_dtype = w2T_ref.dtype

    xT = xT_ref[...]                                       # (s_pad, tb), batch on lanes

    # --- layer 1: (H, s_pad) @ (s_pad, tb) -> (H, tb); single K=8 MXU pass ---
    h1 = jnp.dot(w1T_ref[...], xT.astype(w_dtype),
                 preferred_element_type=jnp.float32)
    h1 = jnp.maximum(h1 + b1_ref[...], 0.0)                # (H,1) bias broadcast, f32 ReLU

    # --- layer 2: (H, H) @ (H, tb) -> (H, tb) on the MXU, f32 accumulate ------
    h2 = jnp.dot(w2T_ref[...], h1.astype(w_dtype),
                 preferred_element_type=jnp.float32)
    h2 = jnp.maximum(h2 + b2_ref[...], 0.0)

    # --- layer 3: (a_pad, H) @ (H, tb) -> (8, tb); tanh over only 8 sublanes --
    a = jnp.tanh(jnp.dot(w3T_ref[...], h2.astype(w_dtype),
                         preferred_element_type=jnp.float32) + b3_ref[...])

    span = jnp.float32(action_upper - action_lower)
    o_ref[...] = (jnp.float32(action_lower) + span * a).astype(o_ref.dtype)


def policy_net_forward(x, params, action_lower, action_upper, *,
                       block_batch=None, weights_dtype=None, core_parallel=False):
    """params = (w1, b1, w2, b2, w3, b3); weights are (in, out), biases (1, out)."""
    w1, b1, w2, b2, w3, b3 = params
    batch, state_dim = x.shape
    hidden = w1.shape[1]
    action_dim = w3.shape[1]

    # Optional: bf16 weights -> native MXU dtype, half the weight DMA/VMEM.
    # (Biases stay f32; activations are only cast at the dot inputs.)
    if weights_dtype is not None:
        w1, w2, w3 = (w.astype(weights_dtype) for w in (w1, w2, w3))

    # ---- wrapper-side layout plumbing: batch on lanes ------------------------
    s_pad = _round_up(max(state_dim, _SUBLANE), _SUBLANE)
    a_pad = _round_up(max(action_dim, _SUBLANE), _SUBLANE)

    if block_batch is None:
        block_batch = 4096                     # sweepable; overhead-bound kernel
    tb = max(_LANE, _round_up(min(block_batch, _round_up(batch, _LANE)), _LANE))
    batch_pad = _round_up(batch, tb)
    num_tiles = batch_pad // tb

    # x^T: (s_pad, batch_pad); padded rows/columns are zero and sliced off below.
    xT = jnp.pad(x, ((0, batch_pad - batch), (0, s_pad - state_dim))).T

    # Pre-transposed weights; biases as (out, 1) f32 columns (sublane-aligned).
    w1T = jnp.pad(w1.T, ((0, 0), (0, s_pad - state_dim)))              # (H, s_pad)
    w2T = w2.T                                                          # (H, H)
    w3T = jnp.pad(w3.T, ((0, a_pad - action_dim), (0, 0)))              # (a_pad, H)
    b1T = b1.reshape(hidden, 1).astype(jnp.float32)
    b2T = b2.reshape(hidden, 1).astype(jnp.float32)
    b3T = jnp.pad(b3.reshape(action_dim, 1).astype(jnp.float32),
                  ((0, a_pad - action_dim), (0, 0)))

    kernel = functools.partial(_policy_kernel,
                               action_lower=float(action_lower),
                               action_upper=float(action_upper))

    # Weights/biases: constant index_map -> fetched once, VMEM-resident across
    # the whole batch grid. Only x^T / out^T tiles are pipelined.
    const2 = lambda i: (0, 0)
    in_specs = [
        pl.BlockSpec((s_pad, tb), lambda i: (0, i)),   # x^T tile (streams, lane-dense)
        pl.BlockSpec(w1T.shape, const2),
        pl.BlockSpec(b1T.shape, const2),
        pl.BlockSpec(w2T.shape, const2),
        pl.BlockSpec(b2T.shape, const2),
        pl.BlockSpec(w3T.shape, const2),
        pl.BlockSpec(b3T.shape, const2),
    ]
    out_specs = pl.BlockSpec((a_pad, tb), lambda i: (0, i))

    # Advisory cost estimate: real work only (tanh over batch*action_dim).
    flops = 2 * batch * (state_dim * hidden + hidden * hidden + hidden * action_dim)
    bytes_accessed = sum(int(a.size) * a.dtype.itemsize
                         for a in (xT, w1T, b1T, w2T, b2T, w3T, b3T))
    bytes_accessed += a_pad * batch_pad * 4
    cost = pl.CostEstimate(flops=flops,
                           transcendentals=batch * action_dim,
                           bytes_accessed=bytes_accessed)

    # v7x: core_parallel=True makes both TensorCores split the batch tiles;
    # plain "parallel"/"arbitrary" does not change codegen on 1-TC chips.
    sem = (pltpu.CORE_PARALLEL,) if core_parallel else ("parallel",)

    outT = pl.pallas_call(
        kernel,
        out_shape=jax.ShapeDtypeStruct((a_pad, batch_pad), jnp.float32),
        grid=(num_tiles,),
        in_specs=in_specs,
        out_specs=out_specs,
        compiler_params=pltpu.CompilerParams(dimension_semantics=sem),
        cost_estimate=cost,
    )(xT, w1T, b1T, w2T, b2T, w3T, b3T)

    # (a_pad, batch_pad) -> (batch, action_dim): tiny slice + transpose.
    return outT[:action_dim, :batch].T


def init_policy_params(key, state_dim, hidden_dim, action_dim, dtype=jnp.float32):
    """Deterministic PyTorch-style Linear init: U(-1/sqrt(fan_in), 1/sqrt(fan_in))."""
    ks = jax.random.split(key, 6)

    def linear(kw, kb, fan_in, fan_out):
        bound = 1.0 / jnp.sqrt(jnp.float32(fan_in))
        w = jax.random.uniform(kw, (fan_in, fan_out), dtype, -bound, bound)
        b = jax.random.uniform(kb, (1, fan_out), dtype, -bound, bound)
        return w, b

    w1, b1 = linear(ks[0], ks[1], state_dim, hidden_dim)
    w2, b2 = linear(ks[2], ks[3], hidden_dim, hidden_dim)
    w3, b3 = linear(ks[4], ks[5], hidden_dim, action_dim)
    return (w1, b1, w2, b2, w3, b3)


if __name__ == "__main__":
    # Pendulum-v1-like sizes from Params: state_dim=3, hidden_dim=128, action_dim=1.
    state_dim, hidden_dim, action_dim = 3, 128, 1
    action_lower, action_upper = -2.0, 2.0

    key = jax.random.PRNGKey(0)
    k_params, k_x1, k_x2 = jax.random.split(key, 3)

    params = init_policy_params(k_params, state_dim, hidden_dim, action_dim)
    w1, b1, w2, b2, w3, b3 = params

    def reference(x):
        h1 = jnp.maximum(x @ w1 + b1, 0.0)
        h2 = jnp.maximum(h1 @ w2 + b2, 0.0)
        return action_lower + (action_upper - action_lower) * jnp.tanh(h2 @ w3 + b3)

    # Case 1: small single-tile batch (grid=(1,)), f32 weights.
    x1 = jax.random.normal(k_x1, (8, state_dim), jnp.float32)
    out1 = jax.block_until_ready(
        policy_net_forward(x1, params, action_lower, action_upper))
    assert out1.shape == (8, action_dim)
    assert jnp.allclose(out1, reference(x1), atol=1e-4, rtol=1e-4)

    # Case 2: ragged multi-tile batch (exercises streaming x^T/out^T tiles and
    # VMEM-resident weights across grid iterations).
    x2 = jax.random.normal(k_x2, (300, state_dim), jnp.float32)
    out2 = jax.block_until_ready(
        policy_net_forward(x2, params, action_lower, action_upper, block_batch=128))
    assert out2.shape == (300, action_dim)
    assert jnp.allclose(out2, reference(x2), atol=1e-4, rtol=1e-4)

    # Case 3: bf16 weights on the native MXU path (looser tolerance vs f32 ref).
    out3 = jax.block_until_ready(
        policy_net_forward(x2, params, action_lower, action_upper,
                           block_batch=128, weights_dtype=jnp.bfloat16))
    assert out3.shape == (300, action_dim)
    assert jnp.allclose(out3, reference(x2), atol=1e-1, rtol=1e-1)

    print("KERNEL_OK")
</pallas_src>

<mosaic_0001>
module attributes {stable_mosaic.version = 11 : i64} {
  func.func @_policy_kernel(%arg0: i32, %arg1: memref<8x128xf32, #tpu.memory_space<vmem>>, %arg2: memref<128x8xf32, #tpu.memory_space<vmem>>, %arg3: memref<128x1xf32, #tpu.memory_space<vmem>>, %arg4: memref<128x128xf32, #tpu.memory_space<vmem>>, %arg5: memref<128x1xf32, #tpu.memory_space<vmem>>, %arg6: memref<8x128xf32, #tpu.memory_space<vmem>>, %arg7: memref<8x1xf32, #tpu.memory_space<vmem>>, %arg8: memref<8x128xf32, #tpu.memory_space<vmem>>) attributes {dimension_semantics = [#tpu.dimension_semantics<parallel>], iteration_bounds = array<i64: 1>, scalar_prefetch = 0 : i64, scratch_operands = 0 : i64, tpu.core_type = #tpu.core_type<tc>, window_params = [{transform_indices = @transform_0, window_bounds = array<i64: 8, 128>}, {pipeline_mode = #tpu.pipeline_mode<synchronous>, transform_indices = @transform_1, window_bounds = array<i64: 128, 8>}, {pipeline_mode = #tpu.pipeline_mode<synchronous>, transform_indices = @transform_2, window_bounds = array<i64: 128, 1>}, {pipeline_mode = #tpu.pipeline_mode<synchronous>, transform_indices = @transform_3, window_bounds = array<i64: 128, 128>}, {pipeline_mode = #tpu.pipeline_mode<synchronous>, transform_indices = @transform_4, window_bounds = array<i64: 128, 1>}, {pipeline_mode = #tpu.pipeline_mode<synchronous>, transform_indices = @transform_5, window_bounds = array<i64: 8, 128>}, {pipeline_mode = #tpu.pipeline_mode<synchronous>, transform_indices = @transform_6, window_bounds = array<i64: 8, 1>}, {transform_indices = @transform_7, window_bounds = array<i64: 8, 128>}]} {
    %c0 = arith.constant 0 : index
    %c0_0 = arith.constant 0 : index
    %0 = vector.load %arg1[%c0, %c0_0] : memref<8x128xf32, #tpu.memory_space<vmem>>, vector<8x128xf32>
    %c0_1 = arith.constant 0 : index
    %c0_2 = arith.constant 0 : index
    %1 = vector.load %arg2[%c0_1, %c0_2] : memref<128x8xf32, #tpu.memory_space<vmem>>, vector<128x8xf32>
    %cst = arith.constant dense<0.000000e+00> : vector<128x128xf32>
    %2 = tpu.matmul %1, %0, %cst {dimension_numbers = #tpu.dot_dimension_numbers<[1], [0], [0], [1], [0, 0, 1, 1], [], []>} : vector<128x8xf32>, vector<8x128xf32>, vector<128x128xf32> -> vector<128x128xf32>
    %c0_3 = arith.constant 0 : index
    %c0_4 = arith.constant 0 : index
    %3 = vector.load %arg3[%c0_3, %c0_4] : memref<128x1xf32, #tpu.memory_space<vmem>>, vector<128x1xf32>
    %4 = vector.broadcast %3 : vector<128x1xf32> to vector<128x128xf32>
    %5 = arith.addf %2, %4 : vector<128x128xf32>
    %cst_5 = arith.constant 0.000000e+00 : f32
    %6 = vector.broadcast %cst_5 : f32 to vector<128x128xf32>
    %7 = arith.maximumf %5, %6 : vector<128x128xf32>
    %c0_6 = arith.constant 0 : index
    %c0_7 = arith.constant 0 : index
    %8 = vector.load %arg4[%c0_6, %c0_7] : memref<128x128xf32, #tpu.memory_space<vmem>>, vector<128x128xf32>
    %cst_8 = arith.constant dense<0.000000e+00> : vector<128x128xf32>
    %9 = tpu.matmul %8, %7, %cst_8 {dimension_numbers = #tpu.dot_dimension_numbers<[1], [0], [0], [1], [0, 0, 1, 1], [], []>} : vector<128x128xf32>, vector<128x128xf32>, vector<128x128xf32> -> vector<128x128xf32>
    %c0_9 = arith.constant 0 : index
    %c0_10 = arith.constant 0 : index
    %10 = vector.load %arg5[%c0_9, %c0_10] : memref<128x1xf32, #tpu.memory_space<vmem>>, vector<128x1xf32>
    %11 = vector.broadcast %10 : vector<128x1xf32> to vector<128x128xf32>
    %12 = arith.addf %9, %11 : vector<128x128xf32>
    %cst_11 = arith.constant 0.000000e+00 : f32
    %13 = vector.broadcast %cst_11 : f32 to vector<128x128xf32>
    %14 = arith.maximumf %12, %13 : vector<128x128xf32>
    %c0_12 = arith.constant 0 : index
    %c0_13 = arith.constant 0 : index
    %15 = vector.load %arg6[%c0_12, %c0_13] : memref<8x128xf32, #tpu.memory_space<vmem>>, vector<8x128xf32>
    %cst_14 = arith.constant dense<0.000000e+00> : vector<8x128xf32>
    %16 = tpu.matmul %15, %14, %cst_14 {dimension_numbers = #tpu.dot_dimension_numbers<[1], [0], [0], [1], [0, 0, 1, 1], [], []>} : vector<8x128xf32>, vector<128x128xf32>, vector<8x128xf32> -> vector<8x128xf32>
    %c0_15 = arith.constant 0 : index
    %c0_16 = arith.constant 0 : index
    %17 = vector.load %arg7[%c0_15, %c0_16] : memref<8x1xf32, #tpu.memory_space<vmem>>, vector<8x1xf32>
    %18 = vector.broadcast %17 : vector<8x1xf32> to vector<8x128xf32>
    %19 = arith.addf %16, %18 : vector<8x128xf32>
    %20 = math.tanh %19 : vector<8x128xf32>
    %cst_17 = arith.constant 4.000000e+00 : f32
    %21 = vector.broadcast %cst_17 : f32 to vector<8x128xf32>
    %22 = arith.mulf %21, %20 : vector<8x128xf32>
    %cst_18 = arith.constant -2.000000e+00 : f32
    %23 = vector.broadcast %cst_18 : f32 to vector<8x128xf32>
    %24 = arith.addf %23, %22 : vector<8x128xf32>
    %c0_19 = arith.constant 0 : index
    %c0_20 = arith.constant 0 : index
    %25 = vector.load %arg8[%c0_19, %c0_20] : memref<8x128xf32, #tpu.memory_space<vmem>>, vector<8x128xf32>
    tpu.vector_store %arg8[%c0_19, %c0_20], %24 {strides = array<i32>} : memref<8x128xf32, #tpu.memory_space<vmem>>, vector<8x128xf32>,
    return
  }
  func.func @transform_0(%arg0: i32) -> (i32, i32) {
    %c0_i32 = arith.constant 0 : i32
    %c0_i32_0 = arith.constant 0 : i32
    return %c0_i32, %arg0 : i32, i32
  }
  func.func @transform_1(%arg0: i32) -> (i32, i32) {
    %c0_i32 = arith.constant 0 : i32
    %c0_i32_0 = arith.constant 0 : i32
    %c0_i32_1 = arith.constant 0 : i32
    return %c0_i32, %c0_i32_0 : i32, i32
  }
  func.func @transform_2(%arg0: i32) -> (i32, i32) {
    %c0_i32 = arith.constant 0 : i32
    %c0_i32_0 = arith.constant 0 : i32
    %c0_i32_1 = arith.constant 0 : i32
    return %c0_i32, %c0_i32_0 : i32, i32
  }
  func.func @transform_3(%arg0: i32) -> (i32, i32) {
    %c0_i32 = arith.constant 0 : i32
    %c0_i32_0 = arith.constant 0 : i32
    %c0_i32_1 = arith.constant 0 : i32
    return %c0_i32, %c0_i32_0 : i32, i32
  }
  func.func @transform_4(%arg0: i32) -> (i32, i32) {
    %c0_i32 = arith.constant 0 : i32
    %c0_i32_0 = arith.constant 0 : i32
    %c0_i32_1 = arith.constant 0 : i32
    return %c0_i32, %c0_i32_0 : i32, i32
  }
  func.func @transform_5(%arg0: i32) -> (i32, i32) {
    %c0_i32 = arith.constant 0 : i32
    %c0_i32_0 = arith.constant 0 : i32
    %c0_i32_1 = arith.constant 0 : i32
    return %c0_i32, %c0_i32_0 : i32, i32
  }
  func.func @transform_6(%arg0: i32) -> (i32, i32) {
    %c0_i32 = arith.constant 0 : i32
    %c0_i32_0 = arith.constant 0 : i32
    %c0_i32_1 = arith.constant 0 : i32
    return %c0_i32, %c0_i32_0 : i32, i32
  }
  func.func @transform_7(%arg0: i32) -> (i32, i32) {
    %c0_i32 = arith.constant 0 : i32
    %c0_i32_0 = arith.constant 0 : i32
    return %c0_i32, %arg0 : i32, i32
  }
}

</mosaic_0001>

<llo_original>
// kernel: tpu_custom_call.1
$region0: #{tpu_custom_call.1}
  #allocation0 [shape = 'u32[]', space=smem, size = 0x4, offset = 0x4, fixed_abs, tag = 'smem constant byte address 0x4 - core index']
  #allocation1 [shape = 'u32[144,128]{1,0:T(1,128)}', space=vmem, size = 0x12000, scoped, tag = 'internal scratch']
  %s0 = inlined_call_operand.vmem [shape: f32[8,128], index: 0, kind: input, shape index: {}]
  %s1 = inlined_call_operand.vmem [shape: f32[128,8], index: 1, kind: input, shape index: {}]
  %s2 = inlined_call_operand.vmem [shape: f32[128,1], index: 2, kind: input, shape index: {}]
  %s3 = inlined_call_operand.vmem [shape: f32[128,128], index: 3, kind: input, shape index: {}]
  %s4 = inlined_call_operand.vmem [shape: f32[128,1], index: 4, kind: input, shape index: {}]
  %s5 = inlined_call_operand.vmem [shape: f32[8,128], index: 5, kind: input, shape index: {}]
  %s6 = inlined_call_operand.vmem [shape: f32[8,1], index: 6, kind: input, shape index: {}]
  %s7 = inlined_call_operand.hbm [shape: f32[8,128], index: 7, kind: output, shape index: {}]
  %s8 = sld [smem:[#allocation0]]
  $region38: #{tpu_custom_call.1} parent=0
    _
  %s10 = ssub.s32 1, %s8
  %s11 = scalar_select 0, %s10, %s8
  $region1: #{tpu_custom_call.1} parent=0
    #allocation2 [shape = 'u8[4096]{0}', space=vmem, size = 0x1000, scoped, tag = 'output window, operand 0, single buffered']
    #allocation3 [shape = 's32[1]{0}', space=sflag, size = 0x4, scoped, tag = 'scoped memory for tpu_custom_call.1']
    %12 = vsyncpa [#allocation3], 0
    // Predicated region
    $region2: #{tpu_custom_call.1} parent=1 // pred_check
      _
    $region3: #{tpu_custom_call.1} parent=1 // pred_check_branch
      %14 = sbr.rel (0) target = $region5
    $region4: #{tpu_custom_call.1} parent=1 // pred_region
      _
    $region5: #{tpu_custom_call.1} parent=1 // pred_fallthru
      _
    // Predicated region
    $region6: #{tpu_custom_call.1} parent=1 // pred_check
      _
    $region7: #{tpu_custom_call.1} parent=1 // pred_check_branch
      %16 = sbr.rel (0) target = $region9
    $region8: #{tpu_custom_call.1} parent=1 // pred_region
      _
    $region9: #{tpu_custom_call.1} parent=1 // pred_fallthru
      _
    // Predicated region
    $region10: #{tpu_custom_call.1} parent=1 // pred_check
      _
    $region11: #{tpu_custom_call.1} parent=1 // pred_check_branch
      %18 = sbr.rel (0) target = $region13
    $region12: #{tpu_custom_call.1} parent=1 // pred_region
      _
    $region13: #{tpu_custom_call.1} parent=1 // pred_fallthru
      _
    // Predicated region
    $region14: #{tpu_custom_call.1} parent=1 // pred_check
      _
    $region15: #{tpu_custom_call.1} parent=1 // pred_check_branch
      %20 = sbr.rel (0) target = $region17
    $region16: #{tpu_custom_call.1} parent=1 // pred_region
      _
    $region17: #{tpu_custom_call.1} parent=1 // pred_fallthru
      _
    // Predicated region
    $region18: #{tpu_custom_call.1} parent=1 // pred_check
      _
    $region19: #{tpu_custom_call.1} parent=1 // pred_check_branch
      %22 = sbr.rel (0) target = $region21
    $region20: #{tpu_custom_call.1} parent=1 // pred_region
      _
    $region21: #{tpu_custom_call.1} parent=1 // pred_fallthru
      _
    // Predicated region
    $region22: #{tpu_custom_call.1} parent=1 // pred_check
      _
    $region23: #{tpu_custom_call.1} parent=1 // pred_check_branch
      %24 = sbr.rel (0) target = $region25
    $region24: #{tpu_custom_call.1} parent=1 // pred_region
      _
    $region25: #{tpu_custom_call.1} parent=1 // pred_fallthru
      _
    // Predicated region
    $region26: #{tpu_custom_call.1} parent=1 // pred_check
      _
    $region27: #{tpu_custom_call.1} parent=1 // pred_check_branch
      %26 = sbr.rel (0) target = $region29
    $region28: #{tpu_custom_call.1} parent=1 // pred_region
      _
    $region29: #{tpu_custom_call.1} parent=1 // pred_fallthru
      _
    %v27 = vld [vmem:[%s0] sm:$0xff]
    %v28 = vld [vmem:[%s1] sm:$0xff]
    %v29 = vld [vmem:[%s1 + $0x8] sm:$0xff]
    %v30 = vld [vmem:[%s1 + $0x10] sm:$0xff]
    %v31 = vld [vmem:[%s1 + $0x18] sm:$0xff]
    %v32 = vld [vmem:[%s1 + $0x20] sm:$0xff]
    %v33 = vld [vmem:[%s1 + $0x28] sm:$0xff]
    %v34 = vld [vmem:[%s1 + $0x30] sm:$0xff]
    %v35 = vld [vmem:[%s1 + $0x38] sm:$0xff]
    %v36 = vld [vmem:[%s1 + $0x40] sm:$0xff]
    %v37 = vld [vmem:[%s1 + $0x48] sm:$0xff]
    %v38 = vld [vmem:[%s1 + $0x50] sm:$0xff]
    %v39 = vld [vmem:[%s1 + $0x58] sm:$0xff]
    %v40 = vld [vmem:[%s1 + $0x60] sm:$0xff]
    %v41 = vld [vmem:[%s1 + $0x68] sm:$0xff]
    %v42 = vld [vmem:[%s1 + $0x70] sm:$0xff]
    %v43 = vld [vmem:[%s1 + $0x78] sm:$0xff]
    %v44 = vld [vmem:[%s2] sm:$0xff]
    %v45 = vld [vmem:[%s2 + $0x8] sm:$0xff]
    %v46 = vld [vmem:[%s2 + $0x10] sm:$0xff]
    %v47 = vld [vmem:[%s2 + $0x18] sm:$0xff]
    %v48 = vld [vmem:[%s2 + $0x20] sm:$0xff]
    %v49 = vld [vmem:[%s2 + $0x28] sm:$0xff]
    %v50 = vld [vmem:[%s2 + $0x30] sm:$0xff]
    %v51 = vld [vmem:[%s2 + $0x38] sm:$0xff]
    %v52 = vld [vmem:[%s2 + $0x40] sm:$0xff]
    %v53 = vld [vmem:[%s2 + $0x48] sm:$0xff]
    %v54 = vld [vmem:[%s2 + $0x50] sm:$0xff]
    %v55 = vld [vmem:[%s2 + $0x58] sm:$0xff]
    %v56 = vld [vmem:[%s2 + $0x60] sm:$0xff]
    %v57 = vld [vmem:[%s2 + $0x68] sm:$0xff]
    %v58 = vld [vmem:[%s2 + $0x70] sm:$0xff]
    %v59 = vld [vmem:[%s2 + $0x78] sm:$0xff]
    %61 = vset.pattern.permute.xlu0 0
    %62 = vperm.xlu0 %61, %v44
    %v63 = vpop.permute.xlu0 %62
    %66 = vset.pattern.permute.xlu0 0
    %67 = vperm.xlu0 %66, %v45
    %v68 = vpop.permute.xlu0 %67
    %71 = vset.pattern.permute.xlu0 0
    %72 = vperm.xlu0 %71, %v46
    %v73 = vpop.permute.xlu0 %72
    %76 = vset.pattern.permute.xlu0 0
    %77 = vperm.xlu0 %76, %v47
    %v78 = vpop.permute.xlu0 %77
    %81 = vset.pattern.permute.xlu0 0
    %82 = vperm.xlu0 %81, %v48
    %v83 = vpop.permute.xlu0 %82
    %86 = vset.pattern.permute.xlu0 0
    %87 = vperm.xlu0 %86, %v49
    %v88 = vpop.permute.xlu0 %87
    %91 = vset.pattern.permute.xlu0 0
    %92 = vperm.xlu0 %91, %v50
    %v93 = vpop.permute.xlu0 %92
    %96 = vset.pattern.permute.xlu0 0
    %97 = vperm.xlu0 %96, %v51
    %v98 = vpop.permute.xlu0 %97
    %101 = vset.pattern.permute.xlu0 0
    %102 = vperm.xlu0 %101, %v52
    %v103 = vpop.permute.xlu0 %102
    %106 = vset.pattern.permute.xlu0 0
    %107 = vperm.xlu0 %106, %v53
    %v108 = vpop.permute.xlu0 %107
    %111 = vset.pattern.permute.xlu0 0
    %112 = vperm.xlu0 %111, %v54
    %v113 = vpop.permute.xlu0 %112
    %116 = vset.pattern.permute.xlu0 0
    %117 = vperm.xlu0 %116, %v55
    %v118 = vpop.permute.xlu0 %117
    %121 = vset.pattern.permute.xlu0 0
    %122 = vperm.xlu0 %121, %v56
    %v123 = vpop.permute.xlu0 %122
    %126 = vset.pattern.permute.xlu0 0
    %127 = vperm.xlu0 %126, %v57
    %v128 = vpop.permute.xlu0 %127
    %131 = vset.pattern.permute.xlu0 0
    %132 = vperm.xlu0 %131, %v58
    %v133 = vpop.permute.xlu0 %132
    %136 = vset.pattern.permute.xlu0 0
    %137 = vperm.xlu0 %136, %v59
    %v138 = vpop.permute.xlu0 %137
    %vm140 = vcmask 64512
    %v142 = vsel %vm140, %v28, 0
    %v145 = vsel %vm140, %v29, 0
    %v148 = vsel %vm140, %v30, 0
    %v151 = vsel %vm140, %v31, 0
    %v154 = vsel %vm140, %v32, 0
    %v157 = vsel %vm140, %v33, 0
    %v160 = vsel %vm140, %v34, 0
    %v163 = vsel %vm140, %v35, 0
    %v166 = vsel %vm140, %v36, 0
    %v169 = vsel %vm140, %v37, 0
    %v172 = vsel %vm140, %v38, 0
    %v175 = vsel %vm140, %v39, 0
    %v178 = vsel %vm140, %v40, 0
    %v181 = vsel %vm140, %v41, 0
    %v184 = vsel %vm140, %v42, 0
    %v187 = vsel %vm140, %v43, 0
    %189 = vmatprep.subr.mxu0 0.0
    %190 = vmatpush1.msra.mxu0 %v27
    %191 = vmatprep.subr.mxu0 0.0
    %192 = vmatpush1.msra.mxu0 0.0
    %193 = vmatprep.subr.mxu0 0.0
    %194 = vmatpush1.msra.mxu0 0.0
    %195 = vmatprep.subr.mxu0 0.0
    %196 = vmatpush1.msra.mxu0 0.0
    %197 = vmatprep.subr.mxu0 0.0
    %198 = vmatpush1.msra.mxu0 0.0
    %199 = vmatprep.subr.mxu0 0.0
    %200 = vmatpush1.msra.mxu0 0.0
    %201 = vmatprep.subr.mxu0 0.0
    %202 = vmatpush1.msra.mxu0 0.0
    %203 = vmatprep.subr.mxu0 0.0
    %204 = vmatpush1.msra.mxu0 0.0
    %205 = vmatprep.subr.mxu0 0.0
    %206 = vmatpush1.msra.mxu0 0.0
    %207 = vmatprep.subr.mxu0 0.0
    %208 = vmatpush1.msra.mxu0 0.0
    %209 = vmatprep.subr.mxu0 0.0
    %210 = vmatpush1.msra.mxu0 0.0
    %211 = vmatprep.subr.mxu0 0.0
    %212 = vmatpush1.msra.mxu0 0.0
    %213 = vmatprep.subr.mxu0 0.0
    %214 = vmatpush1.msra.mxu0 0.0
    %215 = vmatprep.subr.mxu0 0.0
    %216 = vmatpush1.msra.mxu0 0.0
    %217 = vmatprep.subr.mxu0 0.0
    %218 = vmatpush1.msra.mxu0 0.0
    %219 = vmatprep.subr.mxu0 0.0
    %220 = vmatpush1.msra.mxu0 0.0
    %221 = vmatprep.subr.mxu0 0.0
    %222 = vmatpush1.msra.mxu0 0.0
    %223 = vmatprep.subr.mxu0 0.0
    %224 = vmatpush1.msra.mxu0 0.0
    %225 = vmatprep.subr.mxu0 0.0
    %226 = vmatpush1.msra.mxu0 0.0
    %227 = vmatprep.subr.mxu0 0.0
    %228 = vmatpush1.msra.mxu0 0.0
    %229 = vmatprep.subr.mxu0 0.0
    %230 = vmatpush1.msra.mxu0 0.0
    %231 = vmatprep.subr.mxu0 0.0
    %232 = vmatpush1.msra.mxu0 0.0
    %233 = vmatprep.subr.mxu0 0.0
    %234 = vmatpush1.msra.mxu0 0.0
    %235 = vmatprep.subr.mxu0 0.0
    %236 = vmatpush1.msra.mxu0 0.0
    %237 = vmatprep.subr.mxu0 0.0
    %238 = vmatpush1.msra.mxu0 0.0
    %239 = vmatprep.subr.mxu0 0.0
    %240 = vmatpush1.msra.mxu0 0.0
    %241 = vmatprep.subr.mxu0 0.0
    %242 = vmatpush1.msra.mxu0 0.0
    %243 = vmatprep.subr.mxu0 0.0
    %244 = vmatpush1.msra.mxu0 0.0
    %245 = vmatprep.subr.mxu0 0.0
    %246 = vmatpush1.msra.mxu0 0.0
    %247 = vmatprep.subr.mxu0 0.0
    %248 = vmatpush1.msra.mxu0 0.0
    %249 = vmatprep.subr.mxu0 0.0
    %250 = vmatpush1.msra.mxu0 0.0
    %251 = vmatprep.subr.mxu0 0.0
    %252 = vmatpush1.msra.mxu0 0.0
    %253 = vmatprep.mubr.f32.mxu0 0.0
    %254 = vmatmul.mubr.f32.gmra.mrb[0].mxu0 %v142
    %v255 = vpop.f32.mrb[0].mxu0
    %v256 = vadd.f32 %v63, %v255
    %v257 = vpop.f32.mrb[0].mxu0
    %258 = vmatprep.mubr.f32.mxu0 0.0
    %259 = vmatmul.mubr.f32.gmra.mrb[0].mxu0 %v145
    %v260 = vpop.f32.mrb[0].mxu0
    %v261 = vadd.f32 %v68, %v260
    %v262 = vpop.f32.mrb[0].mxu0
    %263 = vmatprep.mubr.f32.mxu0 0.0
    %264 = vmatmul.mubr.f32.gmra.mrb[0].mxu0 %v148
    %v265 = vpop.f32.mrb[0].mxu0
    %v266 = vadd.f32 %v73, %v265
    %v267 = vpop.f32.mrb[0].mxu0
    %268 = vmatprep.mubr.f32.mxu0 0.0
    %269 = vmatmul.mubr.f32.gmra.mrb[0].mxu0 %v151
    %v270 = vpop.f32.mrb[0].mxu0
    %v271 = vadd.f32 %v78, %v270
    %v272 = vpop.f32.mrb[0].mxu0
    %273 = vmatprep.mubr.f32.mxu0 0.0
    %274 = vmatmul.mubr.f32.gmra.mrb[0].mxu0 %v154
    %v275 = vpop.f32.mrb[0].mxu0
    %v276 = vadd.f32 %v83, %v275
    %v277 = vpop.f32.mrb[0].mxu0
    %278 = vmatprep.mubr.f32.mxu0 0.0
    %279 = vmatmul.mubr.f32.gmra.mrb[0].mxu0 %v157
    %v280 = vpop.f32.mrb[0].mxu0
    %v281 = vadd.f32 %v88, %v280
    %v282 = vpop.f32.mrb[0].mxu0
    %283 = vmatprep.mubr.f32.mxu0 0.0
    %284 = vmatmul.mubr.f32.gmra.mrb[0].mxu0 %v160
    %v285 = vpop.f32.mrb[0].mxu0
    %v286 = vadd.f32 %v93, %v285
    %v287 = vpop.f32.mrb[0].mxu0
    %288 = vmatprep.mubr.f32.mxu0 0.0
    %289 = vmatmul.mubr.f32.gmra.mrb[0].mxu0 %v163
    %v290 = vpop.f32.mrb[0].mxu0
    %v291 = vadd.f32 %v98, %v290
    %v292 = vpop.f32.mrb[0].mxu0
    %293 = vmatprep.mubr.f32.mxu0 0.0
    %294 = vmatmul.mubr.f32.gmra.mrb[0].mxu0 %v166
    %v295 = vpop.f32.mrb[0].mxu0
    %v296 = vadd.f32 %v103, %v295
    %v297 = vpop.f32.mrb[0].mxu0
    %298 = vmatprep.mubr.f32.mxu0 0.0
    %299 = vmatmul.mubr.f32.gmra.mrb[0].mxu0 %v169
    %v300 = vpop.f32.mrb[0].mxu0
    %v301 = vadd.f32 %v108, %v300
    %v302 = vpop.f32.mrb[0].mxu0
    %303 = vmatprep.mubr.f32.mxu0 0.0
    %304 = vmatmul.mubr.f32.gmra.mrb[0].mxu0 %v172
    %v305 = vpop.f32.mrb[0].mxu0
    %v306 = vadd.f32 %v113, %v305
    %v307 = vpop.f32.mrb[0].mxu0
    %308 = vmatprep.mubr.f32.mxu0 0.0
    %309 = vmatmul.mubr.f32.gmra.mrb[0].mxu0 %v175
    %v310 = vpop.f32.mrb[0].mxu0
    %v311 = vadd.f32 %v118, %v310
    %v312 = vpop.f32.mrb[0].mxu0
    %313 = vmatprep.mubr.f32.mxu0 0.0
    %314 = vmatmul.mubr.f32.gmra.mrb[0].mxu0 %v178
    %v315 = vpop.f32.mrb[0].mxu0
    %v316 = vadd.f32 %v123, %v315
    %v317 = vpop.f32.mrb[0].mxu0
    %318 = vmatprep.mubr.f32.mxu0 0.0
    %319 = vmatmul.mubr.f32.gmra.mrb[0].mxu0 %v181
    %v320 = vpop.f32.mrb[0].mxu0
    %v321 = vadd.f32 %v128, %v320
    %v322 = vpop.f32.mrb[0].mxu0
    %323 = vmatprep.mubr.f32.mxu0 0.0
    %324 = vmatmul.mubr.f32.gmra.mrb[0].mxu0 %v184
    %v325 = vpop.f32.mrb[0].mxu0
    %v326 = vadd.f32 %v133, %v325
    %v327 = vpop.f32.mrb[0].mxu0
    %328 = vmatprep.mubr.f32.mxu0 0.0
    %329 = vmatmul.mubr.f32.gmra.mrb[0].mxu0 %v187
    %v330 = vpop.f32.mrb[0].mxu0
    %v331 = vadd.f32 %v138, %v330
    %v332 = vpop.f32.mrb[0].mxu0
    %333 = vdwg.mxu0
    %v334 = vmax.f32 %v256, 0.0
    %v335 = vmax.f32 %v261, 0.0
    %v336 = vmax.f32 %v266, 0.0
    %v337 = vmax.f32 %v271, 0.0
    %v338 = vmax.f32 %v276, 0.0
    %v339 = vmax.f32 %v281, 0.0
    %v340 = vmax.f32 %v286, 0.0
    %v341 = vmax.f32 %v291, 0.0
    %v342 = vmax.f32 %v296, 0.0
    %v343 = vmax.f32 %v301, 0.0
    %v344 = vmax.f32 %v306, 0.0
    %v345 = vmax.f32 %v311, 0.0
    %v346 = vmax.f32 %v316, 0.0
    %v347 = vmax.f32 %v321, 0.0
    %v348 = vmax.f32 %v326, 0.0
    %v349 = vmax.f32 %v331, 0.0
    %v350 = vld [vmem:[%s3] sm:$0xff]
    %v351 = vld [vmem:[%s3 + $0x8] sm:$0xff]
    %v352 = vld [vmem:[%s3 + $0x10] sm:$0xff]
    %v353 = vld [vmem:[%s3 + $0x18] sm:$0xff]
    %v354 = vld [vmem:[%s3 + $0x20] sm:$0xff]
    %v355 = vld [vmem:[%s3 + $0x28] sm:$0xff]
    %v356 = vld [vmem:[%s3 + $0x30] sm:$0xff]
    %v357 = vld [vmem:[%s3 + $0x38] sm:$0xff]
    %v358 = vld [vmem:[%s3 + $0x40] sm:$0xff]
    %v359 = vld [vmem:[%s3 + $0x48] sm:$0xff]
    %v360 = vld [vmem:[%s3 + $0x50] sm:$0xff]
    %v361 = vld [vmem:[%s3 + $0x58] sm:$0xff]
    %v362 = vld [vmem:[%s3 + $0x60] sm:$0xff]
    %v363 = vld [vmem:[%s3 + $0x68] sm:$0xff]
    %v364 = vld [vmem:[%s3 + $0x70] sm:$0xff]
    %v365 = vld [vmem:[%s3 + $0x78] sm:$0xff]
    %v366 = vld [vmem:[%s4] sm:$0xff]
    %v367 = vld [vmem:[%s4 + $0x8] sm:$0xff]
    %v368 = vld [vmem:[%s4 + $0x10] sm:$0xff]
    %v369 = vld [vmem:[%s4 + $0x18] sm:$0xff]
    %v370 = vld [vmem:[%s4 + $0x20] sm:$0xff]
    %v371 = vld [vmem:[%s4 + $0x28] sm:$0xff]
    %v372 = vld [vmem:[%s4 + $0x30] sm:$0xff]
    %v373 = vld [vmem:[%s4 + $0x38] sm:$0xff]
    %v374 = vld [vmem:[%s4 + $0x40] sm:$0xff]
    %v375 = vld [vmem:[%s4 + $0x48] sm:$0xff]
    %v376 = vld [vmem:[%s4 + $0x50] sm:$0xff]
    %v377 = vld [vmem:[%s4 + $0x58] sm:$0xff]
    %v378 = vld [vmem:[%s4 + $0x60] sm:$0xff]
    %v379 = vld [vmem:[%s4 + $0x68] sm:$0xff]
    %v380 = vld [vmem:[%s4 + $0x70] sm:$0xff]
    %v381 = vld [vmem:[%s4 + $0x78] sm:$0xff]
    %383 = vset.pattern.permute.xlu0 0
    %384 = vperm.xlu0 %383, %v366
    %v385 = vpop.permute.xlu0 %384
    %388 = vset.pattern.permute.xlu0 0
    %389 = vperm.xlu0 %388, %v367
    %v390 = vpop.permute.xlu0 %389
    %393 = vset.pattern.permute.xlu0 0
    %394 = vperm.xlu0 %393, %v368
    %v395 = vpop.permute.xlu0 %394
    %398 = vset.pattern.permute.xlu0 0
    %399 = vperm.xlu0 %398, %v369
    %v400 = vpop.permute.xlu0 %399
    %403 = vset.pattern.permute.xlu0 0
    %404 = vperm.xlu0 %403, %v370
    %v405 = vpop.permute.xlu0 %404
    %408 = vset.pattern.permute.xlu0 0
    %409 = vperm.xlu0 %408, %v371
    %v410 = vpop.permute.xlu0 %409
    %413 = vset.pattern.permute.xlu0 0
    %414 = vperm.xlu0 %413, %v372
    %v415 = vpop.permute.xlu0 %414
    %418 = vset.pattern.permute.xlu0 0
    %419 = vperm.xlu0 %418, %v373
    %v420 = vpop.permute.xlu0 %419
    %423 = vset.pattern.permute.xlu0 0
    %424 = vperm.xlu0 %423, %v374
    %v425 = vpop.permute.xlu0 %424
    %428 = vset.pattern.permute.xlu0 0
    %429 = vperm.xlu0 %428, %v375
    %v430 = vpop.permute.xlu0 %429
    %433 = vset.pattern.permute.xlu0 0
    %434 = vperm.xlu0 %433, %v376
    %v435 = vpop.permute.xlu0 %434
    %438 = vset.pattern.permute.xlu0 0
    %439 = vperm.xlu0 %438, %v377
    %v440 = vpop.permute.xlu0 %439
    %443 = vset.pattern.permute.xlu0 0
    %444 = vperm.xlu0 %443, %v378
    %v445 = vpop.permute.xlu0 %444
    %448 = vset.pattern.permute.xlu0 0
    %449 = vperm.xlu0 %448, %v379
    %v450 = vpop.permute.xlu0 %449
    %453 = vset.pattern.permute.xlu0 0
    %454 = vperm.xlu0 %453, %v380
    %v455 = vpop.permute.xlu0 %454
    %458 = vset.pattern.permute.xlu0 0
    %459 = vperm.xlu0 %458, %v381
    %v460 = vpop.permute.xlu0 %459
    %462 = vmatprep.subr.mxu0 0.0
    %463 = vmatpush1.msra.mxu0 %v334
    %464 = vmatprep.subr.mxu0 0.0
    %465 = vmatpush1.msra.mxu0 %v335
    %466 = vmatprep.subr.mxu0 0.0
    %467 = vmatpush1.msra.mxu0 %v336
    %468 = vmatprep.subr.mxu0 0.0
    %469 = vmatpush1.msra.mxu0 %v337
    %470 = vmatprep.subr.mxu0 0.0
    %471 = vmatpush1.msra.mxu0 %v338
    %472 = vmatprep.subr.mxu0 0.0
    %473 = vmatpush1.msra.mxu0 %v339
    %474 = vmatprep.subr.mxu0 0.0
    %475 = vmatpush1.msra.mxu0 %v340
    %476 = vmatprep.subr.mxu0 0.0
    %477 = vmatpush1.msra.mxu0 %v341
    %478 = vmatprep.subr.mxu0 0.0
    %479 = vmatpush1.msra.mxu0 %v342
    %480 = vmatprep.subr.mxu0 0.0
    %481 = vmatpush1.msra.mxu0 %v343
    %482 = vmatprep.subr.mxu0 0.0
    %483 = vmatpush1.msra.mxu0 %v344
    %484 = vmatprep.subr.mxu0 0.0
    %485 = vmatpush1.msra.mxu0 %v345
    %486 = vmatprep.subr.mxu0 0.0
    %487 = vmatpush1.msra.mxu0 %v346
    %488 = vmatprep.subr.mxu0 0.0
    %489 = vmatpush1.msra.mxu0 %v347
    %490 = vmatprep.subr.mxu0 0.0
    %491 = vmatpush1.msra.mxu0 %v348
    %492 = vmatprep.subr.mxu0 0.0
    %493 = vmatpush1.msra.mxu0 %v349
    %494 = vmatprep.subr.mxu0 0.0
    %495 = vmatpush1.msra.mxu0 0.0
    %496 = vmatprep.subr.mxu0 0.0
    %497 = vmatpush1.msra.mxu0 0.0
    %498 = vmatprep.subr.mxu0 0.0
    %499 = vmatpush1.msra.mxu0 0.0
    %500 = vmatprep.subr.mxu0 0.0
    %501 = vmatpush1.msra.mxu0 0.0
    %502 = vmatprep.subr.mxu0 0.0
    %503 = vmatpush1.msra.mxu0 0.0
    %504 = vmatprep.subr.mxu0 0.0
    %505 = vmatpush1.msra.mxu0 0.0
    %506 = vmatprep.subr.mxu0 0.0
    %507 = vmatpush1.msra.mxu0 0.0
    %508 = vmatprep.subr.mxu0 0.0
    %509 = vmatpush1.msra.mxu0 0.0
    %510 = vmatprep.subr.mxu0 0.0
    %511 = vmatpush1.msra.mxu0 0.0
    %512 = vmatprep.subr.mxu0 0.0
    %513 = vmatpush1.msra.mxu0 0.0
    %514 = vmatprep.subr.mxu0 0.0
    %515 = vmatpush1.msra.mxu0 0.0
    %516 = vmatprep.subr.mxu0 0.0
    %517 = vmatpush1.msra.mxu0 0.0
    %518 = vmatprep.subr.mxu0 0.0
    %519 = vmatpush1.msra.mxu0 0.0
    %520 = vmatprep.subr.mxu0 0.0
    %521 = vmatpush1.msra.mxu0 0.0
    %522 = vmatprep.subr.mxu0 0.0
    %523 = vmatpush1.msra.mxu0 0.0
    %524 = vmatprep.subr.mxu0 0.0
    %525 = vmatpush1.msra.mxu0 0.0
    %526 = vmatprep.mubr.f32.mxu0 0.0
    %527 = vmatmul.mubr.f32.gmra.mrb[0].mxu0 %v350
    %v528 = vpop.f32.mrb[0].mxu0
    %v529 = vadd.f32 %v385, %v528
    %v530 = vpop.f32.mrb[0].mxu0
    %531 = vmatprep.mubr.f32.mxu0 0.0
    %532 = vmatmul.mubr.f32.gmra.mrb[0].mxu0 %v351
    %v533 = vpop.f32.mrb[0].mxu0
    %v534 = vadd.f32 %v390, %v533
    %v535 = vpop.f32.mrb[0].mxu0
    %536 = vmatprep.mubr.f32.mxu0 0.0
    %537 = vmatmul.mubr.f32.gmra.mrb[0].mxu0 %v352
    %v538 = vpop.f32.mrb[0].mxu0
    %v539 = vadd.f32 %v395, %v538
    %v540 = vpop.f32.mrb[0].mxu0
    %541 = vmatprep.mubr.f32.mxu0 0.0
    %542 = vmatmul.mubr.f32.gmra.mrb[0].mxu0 %v353
    %v543 = vpop.f32.mrb[0].mxu0
    %v544 = vadd.f32 %v400, %v543
    %v545 = vpop.f32.mrb[0].mxu0
    %546 = vmatprep.mubr.f32.mxu0 0.0
    %547 = vmatmul.mubr.f32.gmra.mrb[0].mxu0 %v354
    %v548 = vpop.f32.mrb[0].mxu0
    %v549 = vadd.f32 %v405, %v548
    %v550 = vpop.f32.mrb[0].mxu0
    %551 = vmatprep.mubr.f32.mxu0 0.0
    %552 = vmatmul.mubr.f32.gmra.mrb[0].mxu0 %v355
    %v553 = vpop.f32.mrb[0].mxu0
    %v554 = vadd.f32 %v410, %v553
    %v555 = vpop.f32.mrb[0].mxu0
    %556 = vmatprep.mubr.f32.mxu0 0.0
    %557 = vmatmul.mubr.f32.gmra.mrb[0].mxu0 %v356
    %v558 = vpop.f32.mrb[0].mxu0
    %v559 = vadd.f32 %v415, %v558
    %v560 = vpop.f32.mrb[0].mxu0
    %561 = vmatprep.mubr.f32.mxu0 0.0
    %562 = vmatmul.mubr.f32.gmra.mrb[0].mxu0 %v357
    %v563 = vpop.f32.mrb[0].mxu0
    %v564 = vadd.f32 %v420, %v563
    %v565 = vpop.f32.mrb[0].mxu0
    %566 = vmatprep.mubr.f32.mxu0 0.0
    %567 = vmatmul.mubr.f32.gmra.mrb[0].mxu0 %v358
    %v568 = vpop.f32.mrb[0].mxu0
    %v569 = vadd.f32 %v425, %v568
    %v570 = vpop.f32.mrb[0].mxu0
    %571 = vmatprep.mubr.f32.mxu0 0.0
    %572 = vmatmul.mubr.f32.gmra.mrb[0].mxu0 %v359
    %v573 = vpop.f32.mrb[0].mxu0
    %v574 = vadd.f32 %v430, %v573
    %v575 = vpop.f32.mrb[0].mxu0
    %576 = vmatprep.mubr.f32.mxu0 0.0
    %577 = vmatmul.mubr.f32.gmra.mrb[0].mxu0 %v360
    %v578 = vpop.f32.mrb[0].mxu0
    %v579 = vadd.f32 %v435, %v578
    %v580 = vpop.f32.mrb[0].mxu0
    %581 = vmatprep.mubr.f32.mxu0 0.0
    %582 = vmatmul.mubr.f32.gmra.mrb[0].mxu0 %v361
    %v583 = vpop.f32.mrb[0].mxu0
    %v584 = vadd.f32 %v440, %v583
    %v585 = vpop.f32.mrb[0].mxu0
    %586 = vmatprep.mubr.f32.mxu0 0.0
    %587 = vmatmul.mubr.f32.gmra.mrb[0].mxu0 %v362
    %v588 = vpop.f32.mrb[0].mxu0
    %v589 = vadd.f32 %v445, %v588
    %v590 = vpop.f32.mrb[0].mxu0
    %591 = vmatprep.mubr.f32.mxu0 0.0
    %592 = vmatmul.mubr.f32.gmra.mrb[0].mxu0 %v363
    %v593 = vpop.f32.mrb[0].mxu0
    %v594 = vadd.f32 %v450, %v593
    %v595 = vpop.f32.mrb[0].mxu0
    %596 = vmatprep.mubr.f32.mxu0 0.0
    %597 = vmatmul.mubr.f32.gmra.mrb[0].mxu0 %v364
    %v598 = vpop.f32.mrb[0].mxu0
    %v599 = vadd.f32 %v455, %v598
    %v600 = vpop.f32.mrb[0].mxu0
    %601 = vmatprep.mubr.f32.mxu0 0.0
    %602 = vmatmul.mubr.f32.gmra.mrb[0].mxu0 %v365
    %v603 = vpop.f32.mrb[0].mxu0
    %v604 = vadd.f32 %v460, %v603
    %v605 = vpop.f32.mrb[0].mxu0
    %606 = vdwg.mxu0
    %v607 = vmax.f32 %v529, 0.0
    %v608 = vmax.f32 %v534, 0.0
    %v609 = vmax.f32 %v539, 0.0
    %v610 = vmax.f32 %v544, 0.0
    %v611 = vmax.f32 %v549, 0.0
    %v612 = vmax.f32 %v554, 0.0
    %v613 = vmax.f32 %v559, 0.0
    %v614 = vmax.f32 %v564, 0.0
    %v615 = vmax.f32 %v569, 0.0
    %v616 = vmax.f32 %v574, 0.0
    %v617 = vmax.f32 %v579, 0.0
    %v618 = vmax.f32 %v584, 0.0
    %v619 = vmax.f32 %v589, 0.0
    %v620 = vmax.f32 %v594, 0.0
    %v621 = vmax.f32 %v599, 0.0
    %v622 = vmax.f32 %v604, 0.0
    %v623 = vld [vmem:[%s5] sm:$0xff]
    %v624 = vld [vmem:[%s6] sm:$0xff]
    %626 = vset.pattern.permute.xlu0 0
    %627 = vperm.xlu0 %626, %v624
    %v628 = vpop.permute.xlu0 %627
    %630 = vmatprep.subr.mxu0 0.0
    %631 = vmatpush1.msra.mxu0 %v607
    %632 = vmatprep.subr.mxu0 0.0
    %633 = vmatpush1.msra.mxu0 %v608
    %634 = vmatprep.subr.mxu0 0.0
    %635 = vmatpush1.msra.mxu0 %v609
    %636 = vmatprep.subr.mxu0 0.0
    %637 = vmatpush1.msra.mxu0 %v610
    %638 = vmatprep.subr.mxu0 0.0
    %639 = vmatpush1.msra.mxu0 %v611
    %640 = vmatprep.subr.mxu0 0.0
    %641 = vmatpush1.msra.mxu0 %v612
    %642 = vmatprep.subr.mxu0 0.0
    %643 = vmatpush1.msra.mxu0 %v613
    %644 = vmatprep.subr.mxu0 0.0
    %645 = vmatpush1.msra.mxu0 %v614
    %646 = vmatprep.subr.mxu0 0.0
    %647 = vmatpush1.msra.mxu0 %v615
    %648 = vmatprep.subr.mxu0 0.0
    %649 = vmatpush1.msra.mxu0 %v616
    %650 = vmatprep.subr.mxu0 0.0
    %651 = vmatpush1.msra.mxu0 %v617
    %652 = vmatprep.subr.mxu0 0.0
    %653 = vmatpush1.msra.mxu0 %v618
    %654 = vmatprep.subr.mxu0 0.0
    %655 = vmatpush1.msra.mxu0 %v619
    %656 = vmatprep.subr.mxu0 0.0
    %657 = vmatpush1.msra.mxu0 %v620
    %658 = vmatprep.subr.mxu0 0.0
    %659 = vmatpush1.msra.mxu0 %v621
    %660 = vmatprep.subr.mxu0 0.0
    %661 = vmatpush1.msra.mxu0 %v622
    %662 = vmatprep.subr.mxu0 0.0
    %663 = vmatpush1.msra.mxu0 0.0
    %664 = vmatprep.subr.mxu0 0.0
    %665 = vmatpush1.msra.mxu0 0.0
    %666 = vmatprep.subr.mxu0 0.0
    %667 = vmatpush1.msra.mxu0 0.0
    %668 = vmatprep.subr.mxu0 0.0
    %669 = vmatpush1.msra.mxu0 0.0
    %670 = vmatprep.subr.mxu0 0.0
    %671 = vmatpush1.msra.mxu0 0.0
    %672 = vmatprep.subr.mxu0 0.0
    %673 = vmatpush1.msra.mxu0 0.0
    %674 = vmatprep.subr.mxu0 0.0
    %675 = vmatpush1.msra.mxu0 0.0
    %676 = vmatprep.subr.mxu0 0.0
    %677 = vmatpush1.msra.mxu0 0.0
    %678 = vmatprep.subr.mxu0 0.0
    %679 = vmatpush1.msra.mxu0 0.0
    %680 = vmatprep.subr.mxu0 0.0
    %681 = vmatpush1.msra.mxu0 0.0
    %682 = vmatprep.subr.mxu0 0.0
    %683 = vmatpush1.msra.mxu0 0.0
    %684 = vmatprep.subr.mxu0 0.0
    %685 = vmatpush1.msra.mxu0 0.0
    %686 = vmatprep.subr.mxu0 0.0
    %687 = vmatpush1.msra.mxu0 0.0
    %688 = vmatprep.subr.mxu0 0.0
    %689 = vmatpush1.msra.mxu0 0.0
    %690 = vmatprep.subr.mxu0 0.0
    %691 = vmatpush1.msra.mxu0 0.0
    %692 = vmatprep.subr.mxu0 0.0
    %693 = vmatpush1.msra.mxu0 0.0
    %694 = vmatprep.mubr.f32.mxu0 0.0
    %695 = vmatmul.mubr.f32.gmra.mrb[0].mxu0 %v623
    %v696 = vpop.f32.mrb[0].mxu0
    %v697 = vadd.f32 %v628, %v696
    %v698 = vpop.f32.mrb[0].mxu0
    %699 = vdwg.mxu0
    %v700 = vtanh.pop %v697
    %v701 = vmul.f32 %v700, 4.0
    %v702 = vadd.f32 %v701, -2.0
    %703 = vst [vmem:[#allocation2] sm:$0xff] %v702
    // Predicated region
    $region30: #{tpu_custom_call.1} parent=1 // pred_check
      _
    $region31: #{tpu_custom_call.1} parent=1 // pred_check_branch
      %705 = sbr.rel (0) target = $region33
    $region32: #{tpu_custom_call.1} parent=1 // pred_region
      %s707 = ssub.s32 128, 128
      %708 = vsyncadd [#allocation3], %s707
      %s710 = sshll.u32 [#allocation2], 4
      %s711 = int_to_ptr.vmem [resolvable:$true] %s710
      %713 = dma.vmem_to_hbm [thread:$0]  %s711, 128, %s7, [#allocation3]
    $region33: #{tpu_custom_call.1} parent=1 // pred_fallthru
      _
    // Predicated region
    $region34: #{tpu_custom_call.1} parent=1 // pred_check
      _
    $region35: #{tpu_custom_call.1} parent=1 // pred_check_branch
      %715 = sbr.rel (0) target = $region37
    $region36: #{tpu_custom_call.1} parent=1 // pred_region
      %716 = dma.done [#allocation3], 128
    $region37: #{tpu_custom_call.1} parent=1 // pred_fallthru
      _
    %717 = vsyncpa [#allocation3], 1

</llo_original>
